<compile_context>
chip_gen: v6e
topology: v6e:2x2x1
jax: 0.10.0
libtpu: 0.0.40
codegen_flags: <defaults>
</compile_context>

<pallas_src>
import jax
import jax.numpy as jnp
from jax.experimental import pallas as pl
from jax.experimental.pallas import tpu as pltpu

_LANE = 128


def _round_up(n, m):
    return ((n + m - 1) // m) * m


def _pad2(a, rows, cols):
    r, c = a.shape
    return jnp.pad(a, ((0, rows - r), (0, cols - c)))


def _mlp_kernel(x_ref,
                w1_ref, b1_ref,
                w2_ref, b2_ref,
                w3_ref, b3_ref,
                w4_ref, b4_ref,
                o_ref):
    """Fused 4-layer MLP: (bf16 matmul + f32 bias + ReLU) x3 + final matmul + bias."""
    bf16 = jnp.bfloat16
    f32 = jnp.float32

    # Cast LHS to bf16 right at each dot; weights are already bf16.
    # Accumulate in f32; keep the elementwise (bias/ReLU) path in f32.
    x = x_ref[...].astype(bf16)

    h = jnp.dot(x, w1_ref[...], preferred_element_type=f32) + b1_ref[...]
    h = jnp.maximum(h, 0.0)          # ReLU (Dropout identity in eval)

    h = jnp.dot(h.astype(bf16), w2_ref[...], preferred_element_type=f32) + b2_ref[...]
    h = jnp.maximum(h, 0.0)

    h = jnp.dot(h.astype(bf16), w3_ref[...], preferred_element_type=f32) + b3_ref[...]
    h = jnp.maximum(h, 0.0)

    out = jnp.dot(h.astype(bf16), w4_ref[...], preferred_element_type=f32) + b4_ref[...]
    o_ref[...] = out.astype(o_ref.dtype)


def _choose_batch_tile(B, batch_tile):
    """Pick a sublane-aligned batch tile with >= 2 grid steps when B > 8."""
    if B <= 8:
        # Full-array block (block_shape == array dims is always legal).
        return B
    bt = _round_up(min(batch_tile, _round_up(B, 8)), 8)
    if pl.cdiv(B, bt) < 2:
        # Split into >= 2 grid steps: feeds both v7x TensorCores
        # ("parallel" axis) and lets the x-tile DMA pipeline behind compute.
        bt = max(8, _round_up(pl.cdiv(B, 2), 8))
    return bt


def polymer_predictor_forward(x, params, *, batch_tile=1024):
    """Run the fused MLP Pallas kernel.

    x:      (B, input_dim) float32
    params: dict with w1..w4 (in,out) and b1..b4 (1,out), float32
    batch_tile: max rows per grid step (1024-2048 is the sweet spot for large
                batches; automatically reduced for small inputs so the grid
                still has >= 2 steps).
    """
    B, d_in = x.shape
    w1, b1 = params["w1"], params["b1"]
    w2, b2 = params["w2"], params["b2"]
    w3, b3 = params["w3"], params["b3"]
    w4, b4 = params["w4"], params["b4"]
    out_dim = w4.shape[1]

    # ---- lane-pad hidden layers to 128 (zero padding is inert: ReLU(0)=0) ----
    h1p = _round_up(w1.shape[1], _LANE)   # 128
    h2p = _round_up(w2.shape[1], _LANE)   # 64  -> 128
    h3p = _round_up(w3.shape[1], _LANE)   # 32  -> 128

    bf16 = jnp.bfloat16
    w1p = _pad2(w1, d_in, h1p).astype(bf16)
    b1p = _pad2(b1, 1, h1p)                       # biases stay f32
    w2p = _pad2(w2, h1p, h2p).astype(bf16)
    b2p = _pad2(b2, 1, h2p)
    w3p = _pad2(w3, h2p, h3p).astype(bf16)
    b3p = _pad2(b3, 1, h3p)
    w4p = _pad2(w4, h3p, out_dim).astype(bf16)    # rows padded, output kept narrow
    b4p = b4

    # ---- tiling: no jnp.pad of x; ragged last block handled by Pallas ----
    bt = _choose_batch_tile(B, batch_tile)
    grid = (pl.cdiv(B, bt),)

    def resident(shape):
        # Full-array block, same block index for every grid step -> stays in
        # VMEM, no per-step re-DMA.
        return pl.BlockSpec(shape, lambda i: (0, 0))

    weight_bytes = sum(int(a.size) * a.dtype.itemsize
                       for a in (w1p, b1p, w2p, b2p, w3p, b3p, w4p, b4p))
    cost = pl.CostEstimate(
        flops=2 * B * (d_in * h1p + h1p * h2p + h2p * h3p + h3p * out_dim),
        transcendentals=0,
        bytes_accessed=B * d_in * 4 + B * out_dim * 4 + weight_bytes,
    )

    out = pl.pallas_call(
        _mlp_kernel,
        out_shape=jax.ShapeDtypeStruct((B, out_dim), jnp.float32),
        grid_spec=pltpu.PrefetchScalarGridSpec(
            num_scalar_prefetch=0,
            grid=grid,
            in_specs=[
                pl.BlockSpec((bt, d_in), lambda i: (i, 0)),   # x tile
                resident(w1p.shape), resident(b1p.shape),
                resident(w2p.shape), resident(b2p.shape),
                resident(w3p.shape), resident(b3p.shape),
                resident(w4p.shape), resident(b4p.shape),
            ],
            out_specs=pl.BlockSpec((bt, out_dim), lambda i: (i, 0)),
        ),
        compiler_params=pltpu.CompilerParams(
            dimension_semantics=("parallel",),   # shard batch grid over TCs (v7x)
        ),
        cost_estimate=cost,
    )(x, w1p, b1p, w2p, b2p, w3p, b3p, w4p, b4p)

    return out


def init_params(key, input_dim, hidden_dims=(128, 64, 32), out_dim=2):
    """PyTorch-Linear-style init: U(-1/sqrt(fan_in), 1/sqrt(fan_in))."""
    params = {}
    dims = [input_dim] + list(hidden_dims) + [out_dim]
    for li, (fan_in, fan_out) in enumerate(zip(dims[:-1], dims[1:]), start=1):
        key, kw, kb = jax.random.split(key, 3)
        bound = 1.0 / (fan_in ** 0.5)
        params[f"w{li}"] = jax.random.uniform(
            kw, (fan_in, fan_out), jnp.float32, minval=-bound, maxval=bound)
        params[f"b{li}"] = jax.random.uniform(
            kb, (1, fan_out), jnp.float32, minval=-bound, maxval=bound)
    return params


def reference_forward_f32(x, params):
    h = jnp.maximum(x @ params["w1"] + params["b1"], 0.0)
    h = jnp.maximum(h @ params["w2"] + params["b2"], 0.0)
    h = jnp.maximum(h @ params["w3"] + params["b3"], 0.0)
    return h @ params["w4"] + params["b4"]


def reference_forward_bf16(x, params):
    """Same math as the kernel: bf16 MXU operands, f32 accumulation/elementwise."""
    def dot(a, w):
        return jnp.dot(a.astype(jnp.bfloat16), w.astype(jnp.bfloat16),
                       preferred_element_type=jnp.float32)
    h = jnp.maximum(dot(x, params["w1"]) + params["b1"], 0.0)
    h = jnp.maximum(dot(h, params["w2"]) + params["b2"], 0.0)
    h = jnp.maximum(dot(h, params["w3"]) + params["b3"], 0.0)
    return dot(h, params["w4"]) + params["b4"]


if __name__ == "__main__":
    key = jax.random.PRNGKey(0)
    key, kx1, kx2 = jax.random.split(key, 3)

    input_dim = 32
    params = init_params(key, input_dim)

    # Tile-aligned batch (tile auto-halves to 8 so the grid has 2 steps).
    x1 = jax.random.normal(kx1, (16, input_dim), dtype=jnp.float32)
    out1 = jax.block_until_ready(polymer_predictor_forward(x1, params))
    assert out1.shape == (16, 2)
    assert jnp.allclose(out1, reference_forward_bf16(x1, params), atol=2e-3, rtol=2e-3)
    assert jnp.allclose(out1, reference_forward_f32(x1, params), atol=5e-2, rtol=5e-2)

    # Non-tile-multiple batch exercises the ragged (masked) last block.
    x2 = jax.random.normal(kx2, (20, input_dim), dtype=jnp.float32)
    out2 = jax.block_until_ready(
        polymer_predictor_forward(x2, params, batch_tile=8))
    assert out2.shape == (20, 2)
    assert jnp.allclose(out2, reference_forward_bf16(x2, params), atol=2e-3, rtol=2e-3)
    assert jnp.allclose(out2, reference_forward_f32(x2, params), atol=5e-2, rtol=5e-2)

    print("KERNEL_OK")
</pallas_src>

<mosaic_0001>
module attributes {stable_mosaic.version = 11 : i64} {
  func.func @_mlp_kernel(%arg0: i32, %arg1: memref<8x32xf32, #tpu.memory_space<vmem>>, %arg2: memref<32x128xbf16, #tpu.memory_space<vmem>>, %arg3: memref<1x128xf32, #tpu.memory_space<vmem>>, %arg4: memref<128x128xbf16, #tpu.memory_space<vmem>>, %arg5: memref<1x128xf32, #tpu.memory_space<vmem>>, %arg6: memref<128x128xbf16, #tpu.memory_space<vmem>>, %arg7: memref<1x128xf32, #tpu.memory_space<vmem>>, %arg8: memref<128x2xbf16, #tpu.memory_space<vmem>>, %arg9: memref<1x2xf32, #tpu.memory_space<vmem>>, %arg10: memref<8x2xf32, #tpu.memory_space<vmem>>) attributes {dimension_semantics = [#tpu.dimension_semantics<parallel>], iteration_bounds = array<i64: 2>, scalar_prefetch = 0 : i64, scratch_operands = 0 : i64, tpu.core_type = #tpu.core_type<tc>, window_params = [{transform_indices = @transform_0, window_bounds = array<i64: 8, 32>}, {pipeline_mode = #tpu.pipeline_mode<synchronous>, transform_indices = @transform_1, window_bounds = array<i64: 32, 128>}, {pipeline_mode = #tpu.pipeline_mode<synchronous>, transform_indices = @transform_2, window_bounds = array<i64: 1, 128>}, {pipeline_mode = #tpu.pipeline_mode<synchronous>, transform_indices = @transform_3, window_bounds = array<i64: 128, 128>}, {pipeline_mode = #tpu.pipeline_mode<synchronous>, transform_indices = @transform_4, window_bounds = array<i64: 1, 128>}, {pipeline_mode = #tpu.pipeline_mode<synchronous>, transform_indices = @transform_5, window_bounds = array<i64: 128, 128>}, {pipeline_mode = #tpu.pipeline_mode<synchronous>, transform_indices = @transform_6, window_bounds = array<i64: 1, 128>}, {pipeline_mode = #tpu.pipeline_mode<synchronous>, transform_indices = @transform_7, window_bounds = array<i64: 128, 2>}, {pipeline_mode = #tpu.pipeline_mode<synchronous>, transform_indices = @transform_8, window_bounds = array<i64: 1, 2>}, {transform_indices = @transform_9, window_bounds = array<i64: 8, 2>}]} {
    %c0 = arith.constant 0 : index
    %c0_0 = arith.constant 0 : index
    %0 = vector.load %arg1[%c0, %c0_0] : memref<8x32xf32, #tpu.memory_space<vmem>>, vector<8x32xf32>
    %1 = arith.truncf %0 : vector<8x32xf32> to vector<8x32xbf16>
    %c0_1 = arith.constant 0 : index
    %c0_2 = arith.constant 0 : index
    %2 = vector.load %arg2[%c0_1, %c0_2] : memref<32x128xbf16, #tpu.memory_space<vmem>>, vector<32x128xbf16>
    %cst = arith.constant dense<0.000000e+00> : vector<8x128xf32>
    %3 = tpu.matmul %1, %2, %cst {dimension_numbers = #tpu.dot_dimension_numbers<[1], [0], [0], [1], [0, 0, 1, 1], [], []>} : vector<8x32xbf16>, vector<32x128xbf16>, vector<8x128xf32> -> vector<8x128xf32>
    %c0_3 = arith.constant 0 : index
    %c0_4 = arith.constant 0 : index
    %4 = vector.load %arg3[%c0_3, %c0_4] : memref<1x128xf32, #tpu.memory_space<vmem>>, vector<1x128xf32>
    %5 = vector.broadcast %4 : vector<1x128xf32> to vector<8x128xf32>
    %6 = arith.addf %3, %5 : vector<8x128xf32>
    %cst_5 = arith.constant 0.000000e+00 : f32
    %7 = vector.broadcast %cst_5 : f32 to vector<8x128xf32>
    %8 = arith.maximumf %6, %7 : vector<8x128xf32>
    %9 = arith.truncf %8 : vector<8x128xf32> to vector<8x128xbf16>
    %c0_6 = arith.constant 0 : index
    %c0_7 = arith.constant 0 : index
    %10 = vector.load %arg4[%c0_6, %c0_7] : memref<128x128xbf16, #tpu.memory_space<vmem>>, vector<128x128xbf16>
    %cst_8 = arith.constant dense<0.000000e+00> : vector<8x128xf32>
    %11 = tpu.matmul %9, %10, %cst_8 {dimension_numbers = #tpu.dot_dimension_numbers<[1], [0], [0], [1], [0, 0, 1, 1], [], []>} : vector<8x128xbf16>, vector<128x128xbf16>, vector<8x128xf32> -> vector<8x128xf32>
    %c0_9 = arith.constant 0 : index
    %c0_10 = arith.constant 0 : index
    %12 = vector.load %arg5[%c0_9, %c0_10] : memref<1x128xf32, #tpu.memory_space<vmem>>, vector<1x128xf32>
    %13 = vector.broadcast %12 : vector<1x128xf32> to vector<8x128xf32>
    %14 = arith.addf %11, %13 : vector<8x128xf32>
    %cst_11 = arith.constant 0.000000e+00 : f32
    %15 = vector.broadcast %cst_11 : f32 to vector<8x128xf32>
    %16 = arith.maximumf %14, %15 : vector<8x128xf32>
    %17 = arith.truncf %16 : vector<8x128xf32> to vector<8x128xbf16>
    %c0_12 = arith.constant 0 : index
    %c0_13 = arith.constant 0 : index
    %18 = vector.load %arg6[%c0_12, %c0_13] : memref<128x128xbf16, #tpu.memory_space<vmem>>, vector<128x128xbf16>
    %cst_14 = arith.constant dense<0.000000e+00> : vector<8x128xf32>
    %19 = tpu.matmul %17, %18, %cst_14 {dimension_numbers = #tpu.dot_dimension_numbers<[1], [0], [0], [1], [0, 0, 1, 1], [], []>} : vector<8x128xbf16>, vector<128x128xbf16>, vector<8x128xf32> -> vector<8x128xf32>
    %c0_15 = arith.constant 0 : index
    %c0_16 = arith.constant 0 : index
    %20 = vector.load %arg7[%c0_15, %c0_16] : memref<1x128xf32, #tpu.memory_space<vmem>>, vector<1x128xf32>
    %21 = vector.broadcast %20 : vector<1x128xf32> to vector<8x128xf32>
    %22 = arith.addf %19, %21 : vector<8x128xf32>
    %cst_17 = arith.constant 0.000000e+00 : f32
    %23 = vector.broadcast %cst_17 : f32 to vector<8x128xf32>
    %24 = arith.maximumf %22, %23 : vector<8x128xf32>
    %25 = arith.truncf %24 : vector<8x128xf32> to vector<8x128xbf16>
    %c0_18 = arith.constant 0 : index
    %c0_19 = arith.constant 0 : index
    %26 = vector.load %arg8[%c0_18, %c0_19] : memref<128x2xbf16, #tpu.memory_space<vmem>>, vector<128x2xbf16>
    %cst_20 = arith.constant dense<0.000000e+00> : vector<8x2xf32>
    %27 = tpu.matmul %25, %26, %cst_20 {dimension_numbers = #tpu.dot_dimension_numbers<[1], [0], [0], [1], [0, 0, 1, 1], [], []>} : vector<8x128xbf16>, vector<128x2xbf16>, vector<8x2xf32> -> vector<8x2xf32>
    %c0_21 = arith.constant 0 : index
    %c0_22 = arith.constant 0 : index
    %28 = vector.load %arg9[%c0_21, %c0_22] : memref<1x2xf32, #tpu.memory_space<vmem>>, vector<1x2xf32>
    %29 = vector.broadcast %28 : vector<1x2xf32> to vector<8x2xf32>
    %30 = arith.addf %27, %29 : vector<8x2xf32>
    %c0_23 = arith.constant 0 : index
    %c0_24 = arith.constant 0 : index
    %31 = vector.load %arg10[%c0_23, %c0_24] : memref<8x2xf32, #tpu.memory_space<vmem>>, vector<8x2xf32>
    tpu.vector_store %arg10[%c0_23, %c0_24], %30 {strides = array<i32>} : memref<8x2xf32, #tpu.memory_space<vmem>>, vector<8x2xf32>,
    return
  }
  func.func @transform_0(%arg0: i32) -> (i32, i32) {
    %c0_i32 = arith.constant 0 : i32
    %c0_i32_0 = arith.constant 0 : i32
    return %arg0, %c0_i32 : i32, i32
  }
  func.func @transform_1(%arg0: i32) -> (i32, i32) {
    %c0_i32 = arith.constant 0 : i32
    %c0_i32_0 = arith.constant 0 : i32
    %c0_i32_1 = arith.constant 0 : i32
    return %c0_i32, %c0_i32_0 : i32, i32
  }
  func.func @transform_2(%arg0: i32) -> (i32, i32) {
    %c0_i32 = arith.constant 0 : i32
    %c0_i32_0 = arith.constant 0 : i32
    %c0_i32_1 = arith.constant 0 : i32
    return %c0_i32, %c0_i32_0 : i32, i32
  }
  func.func @transform_3(%arg0: i32) -> (i32, i32) {
    %c0_i32 = arith.constant 0 : i32
    %c0_i32_0 = arith.constant 0 : i32
    %c0_i32_1 = arith.constant 0 : i32
    return %c0_i32, %c0_i32_0 : i32, i32
  }
  func.func @transform_4(%arg0: i32) -> (i32, i32) {
    %c0_i32 = arith.constant 0 : i32
    %c0_i32_0 = arith.constant 0 : i32
    %c0_i32_1 = arith.constant 0 : i32
    return %c0_i32, %c0_i32_0 : i32, i32
  }
  func.func @transform_5(%arg0: i32) -> (i32, i32) {
    %c0_i32 = arith.constant 0 : i32
    %c0_i32_0 = arith.constant 0 : i32
    %c0_i32_1 = arith.constant 0 : i32
    return %c0_i32, %c0_i32_0 : i32, i32
  }
  func.func @transform_6(%arg0: i32) -> (i32, i32) {
    %c0_i32 = arith.constant 0 : i32
    %c0_i32_0 = arith.constant 0 : i32
    %c0_i32_1 = arith.constant 0 : i32
    return %c0_i32, %c0_i32_0 : i32, i32
  }
  func.func @transform_7(%arg0: i32) -> (i32, i32) {
    %c0_i32 = arith.constant 0 : i32
    %c0_i32_0 = arith.constant 0 : i32
    %c0_i32_1 = arith.constant 0 : i32
    return %c0_i32, %c0_i32_0 : i32, i32
  }
  func.func @transform_8(%arg0: i32) -> (i32, i32) {
    %c0_i32 = arith.constant 0 : i32
    %c0_i32_0 = arith.constant 0 : i32
    %c0_i32_1 = arith.constant 0 : i32
    return %c0_i32, %c0_i32_0 : i32, i32
  }
  func.func @transform_9(%arg0: i32) -> (i32, i32) {
    %c0_i32 = arith.constant 0 : i32
    %c0_i32_0 = arith.constant 0 : i32
    return %arg0, %c0_i32 : i32, i32
  }
}

</mosaic_0001>

<llo_original>
// kernel: tpu_custom_call.1
$region0: #{tpu_custom_call.1}
  #allocation0 [shape = 'u32[]', space=smem, size = 0x4, offset = 0x4, fixed_abs, tag = 'smem constant byte address 0x4 - core index']
  #allocation1 [shape = 'u32[144,128]{1,0:T(1,128)}', space=vmem, size = 0x12000, scoped, tag = 'internal scratch']
  %s0 = inlined_call_operand.hbm [shape: f32[16,32], index: 0, kind: input, shape index: {}]
  %s1 = inlined_call_operand.hbm [shape: bf16[32,128], index: 1, kind: input, shape index: {}]
  %s2 = inlined_call_operand.vmem [shape: f32[1,128], index: 2, kind: input, shape index: {}]
  %s3 = inlined_call_operand.vmem [shape: bf16[128,128], index: 3, kind: input, shape index: {}]
  %s4 = inlined_call_operand.vmem [shape: f32[1,128], index: 4, kind: input, shape index: {}]
  %s5 = inlined_call_operand.hbm [shape: bf16[128,128], index: 5, kind: input, shape index: {}]
  %s6 = inlined_call_operand.vmem [shape: f32[1,128], index: 6, kind: input, shape index: {}]
  %s7 = inlined_call_operand.vmem [shape: bf16[128,2], index: 7, kind: input, shape index: {}]
  %s8 = inlined_call_operand.vmem [shape: f32[1,2], index: 8, kind: input, shape index: {}]
  %s9 = inlined_call_operand.vmem [shape: f32[16,2], index: 9, kind: output, shape index: {}]
  %s10 = sld [smem:[#allocation0]]
  $region81: #{tpu_custom_call.1} parent=0
    _
  %s12 = ssub.s32 1, %s10
  %s13 = scalar_select 0, %s12, %s10
  $region1: #{tpu_custom_call.1} parent=0
    #allocation2 [shape = 'u8[8192]{0}', space=vmem, size = 0x2000, scoped, tag = 'input window, operand 0']
    #allocation3 [shape = 's32[2]{0}', space=sflag, size = 0x8, scoped, tag = 'scoped memory for tpu_custom_call.1']
    #allocation4 [shape = 'u8[8192]{0}', space=vmem, size = 0x2000, scoped, tag = 'input window, operand 1, single buffered']
    #allocation5 [shape = 's32[1]{0}', space=sflag, size = 0x4, scoped, tag = 'scoped memory for tpu_custom_call.1']
    #allocation6 [shape = 'u8[32768]{0}', space=vmem, size = 0x8000, scoped, tag = 'input window, operand 5, single buffered']
    %14 = vsyncpa [#allocation3], 0
    %s15 = scalar_lea.sflag [#allocation3], 1
    %16 = vsyncpa %s15, 0
    %17 = vsyncpa [#allocation5], 0
    loop: start=0, step=1, limit=4
    $region2: #{tpu_custom_call.1} parent=1 // loop_pre_header
      _
    $region3: #{tpu_custom_call.1} parent=1 // loop_header
      %s19 = sphi 0, %s23
      %p20 = scmp.ge.s32.totalorder %s19, 4
      %s29 = sphi 0, %s31
      %s32 = sphi 0, %s29
      %s33 = sphi 0, %s32
      %s49 = sphi 0, %s33
      %s53 = sphi 0, %s53
      %s55 = sphi 0, %s53
      %s56 = sphi 0, %s55
      %s70 = sphi 0, %s56
      %s74 = sphi 0, %s74
      %s76 = sphi 0, %s74
      %s77 = sphi 0, %s76
      %s91 = sphi 0, %s77
      %s95 = sphi 0, %s95
      %s97 = sphi 0, %s95
      %s98 = sphi 0, %s97
      %s112 = sphi 0, %s98
      %s116 = sphi 0, %s116
      %s118 = sphi 0, %s116
      %s119 = sphi 0, %s118
      %s133 = sphi 0, %s119
      %s137 = sphi 0, %s137
      %s139 = sphi 0, %s137
      %s140 = sphi 0, %s139
      %s154 = sphi 0, %s140
      %s158 = sphi 0, %s158
      %s160 = sphi 0, %s158
      %s161 = sphi 0, %s160
      %s175 = sphi 0, %s161
      %s179 = sphi 0, %s179
      %s181 = sphi 0, %s179
      %s182 = sphi 0, %s181
      %s196 = sphi 0, %s182
      %s200 = sphi 0, %s200
      %s202 = sphi 0, %s200
      %s203 = sphi 0, %s202
      %s217 = sphi 0, %s203
      %s223 = sphi 0, %s225
      %s226 = sphi 0, %s223
      %s227 = sphi 0, %s226
      %s243 = sphi 0, %s227
    $region4: #{tpu_custom_call.1} parent=1 // loop_header_branch
      %22 = sbr.rel (%p20) target = $region8
    $region5: #{tpu_custom_call.1} parent=1 // loop_body
      %s24 = ssub.s32 %s19, 1
      %s25 = ssub.s32 %s19, 2
      %s26 = sadd.s32 %s19, 1
      %s27 = ssub.s32 %s19, %s26
      %p28 = scmp.eq.s32.totalorder %s27, 0
      %s30 = sadd.s32 %s29, 1
      %s31 = scalar_select %p28, %s29, %s30
      %p34 = pneg %p28
      %p35 = scmp.eq.s32.totalorder %s19, 1
      %p36 = por %p34, %p35
      %p37 = scmp.ne.s32.totalorder %s29, %s32
      %p38 = scmp.eq.s32.totalorder %s19, 0
      %p39 = por %p37, %p38
      %p40 = scmp.ne.s32.totalorder %s29, %s32
      %p41 = scmp.eq.s32.totalorder %s24, 1
      %p42 = por %p40, %p41
      %p43 = scmp.ne.s32.totalorder %s32, %s33
      %p44 = scmp.eq.s32.totalorder %s24, 0
      %p45 = por %p43, %p44
      %p46 = scmp.ne.s32.totalorder %s32, %s33
      %p47 = scmp.eq.s32.totalorder %s25, 1
      %p48 = por %p46, %p47
      %p50 = scmp.ne.s32.totalorder %s33, %s49
      %p51 = scmp.eq.s32.totalorder %s25, 0
      %p52 = por %p50, %p51
      %s54 = sadd.s32 %s53, 1
      %p57 = scmp.eq.s32.totalorder %s19, 1
      %p58 = scmp.ne.s32.totalorder %s53, %s55
      %p59 = scmp.eq.s32.totalorder %s19, 0
      %p60 = por %p58, %p59
      %p61 = scmp.ne.s32.totalorder %s53, %s55
      %p62 = scmp.eq.s32.totalorder %s24, 1
      %p63 = por %p61, %p62
      %p64 = scmp.ne.s32.totalorder %s55, %s56
      %p65 = scmp.eq.s32.totalorder %s24, 0
      %p66 = por %p64, %p65
      %p67 = scmp.ne.s32.totalorder %s55, %s56
      %p68 = scmp.eq.s32.totalorder %s25, 1
      %p69 = por %p67, %p68
      %p71 = scmp.ne.s32.totalorder %s56, %s70
      %p72 = scmp.eq.s32.totalorder %s25, 0
      %p73 = por %p71, %p72
      %s75 = sadd.s32 %s74, 1
      %p78 = scmp.eq.s32.totalorder %s19, 1
      %p79 = scmp.ne.s32.totalorder %s74, %s76
      %p80 = scmp.eq.s32.totalorder %s19, 0
      %p81 = por %p79, %p80
      %p82 = scmp.ne.s32.totalorder %s74, %s76
      %p83 = scmp.eq.s32.totalorder %s24, 1
      %p84 = por %p82, %p83
      %p85 = scmp.ne.s32.totalorder %s76, %s77
      %p86 = scmp.eq.s32.totalorder %s24, 0
      %p87 = por %p85, %p86
      %p88 = scmp.ne.s32.totalorder %s76, %s77
      %p89 = scmp.eq.s32.totalorder %s25, 1
      %p90 = por %p88, %p89
      %p92 = scmp.ne.s32.totalorder %s77, %s91
      %p93 = scmp.eq.s32.totalorder %s25, 0
      %p94 = por %p92, %p93
      %s96 = sadd.s32 %s95, 1
      %p99 = scmp.eq.s32.totalorder %s19, 1
      %p100 = scmp.ne.s32.totalorder %s95, %s97
      %p101 = scmp.eq.s32.totalorder %s19, 0
      %p102 = por %p100, %p101
      %p103 = scmp.ne.s32.totalorder %s95, %s97
      %p104 = scmp.eq.s32.totalorder %s24, 1
      %p105 = por %p103, %p104
      %p106 = scmp.ne.s32.totalorder %s97, %s98
      %p107 = scmp.eq.s32.totalorder %s24, 0
      %p108 = por %p106, %p107
      %p109 = scmp.ne.s32.totalorder %s97, %s98
      %p110 = scmp.eq.s32.totalorder %s25, 1
      %p111 = por %p109, %p110
      %p113 = scmp.ne.s32.totalorder %s98, %s112
      %p114 = scmp.eq.s32.totalorder %s25, 0
      %p115 = por %p113, %p114
      %s117 = sadd.s32 %s116, 1
      %p120 = scmp.eq.s32.totalorder %s19, 1
      %p121 = scmp.ne.s32.totalorder %s116, %s118
      %p122 = scmp.eq.s32.totalorder %s19, 0
      %p123 = por %p121, %p122
      %p124 = scmp.ne.s32.totalorder %s116, %s118
      %p125 = scmp.eq.s32.totalorder %s24, 1
      %p126 = por %p124, %p125
      %p127 = scmp.ne.s32.totalorder %s118, %s119
      %p128 = scmp.eq.s32.totalorder %s24, 0
      %p129 = por %p127, %p128
      %p130 = scmp.ne.s32.totalorder %s118, %s119
      %p131 = scmp.eq.s32.totalorder %s25, 1
      %p132 = por %p130, %p131
      %p134 = scmp.ne.s32.totalorder %s119, %s133
      %p135 = scmp.eq.s32.totalorder %s25, 0
      %p136 = por %p134, %p135
      %s138 = sadd.s32 %s137, 1
      %p141 = scmp.eq.s32.totalorder %s19, 1
      %p142 = scmp.ne.s32.totalorder %s137, %s139
      %p143 = scmp.eq.s32.totalorder %s19, 0
      %p144 = por %p142, %p143
      %p145 = scmp.ne.s32.totalorder %s137, %s139
      %p146 = scmp.eq.s32.totalorder %s24, 1
      %p147 = por %p145, %p146
      %p148 = scmp.ne.s32.totalorder %s139, %s140
      %p149 = scmp.eq.s32.totalorder %s24, 0
      %p150 = por %p148, %p149
      %p151 = scmp.ne.s32.totalorder %s139, %s140
      %p152 = scmp.eq.s32.totalorder %s25, 1
      %p153 = por %p151, %p152
      %p155 = scmp.ne.s32.totalorder %s140, %s154
      %p156 = scmp.eq.s32.totalorder %s25, 0
      %p157 = por %p155, %p156
      %s159 = sadd.s32 %s158, 1
      %p162 = scmp.eq.s32.totalorder %s19, 1
      %p163 = scmp.ne.s32.totalorder %s158, %s160
      %p164 = scmp.eq.s32.totalorder %s19, 0
      %p165 = por %p163, %p164
      %p166 = scmp.ne.s32.totalorder %s158, %s160
      %p167 = scmp.eq.s32.totalorder %s24, 1
      %p168 = por %p166, %p167
      %p169 = scmp.ne.s32.totalorder %s160, %s161
      %p170 = scmp.eq.s32.totalorder %s24, 0
      %p171 = por %p169, %p170
      %p172 = scmp.ne.s32.totalorder %s160, %s161
      %p173 = scmp.eq.s32.totalorder %s25, 1
      %p174 = por %p172, %p173
      %p176 = scmp.ne.s32.totalorder %s161, %s175
      %p177 = scmp.eq.s32.totalorder %s25, 0
      %p178 = por %p176, %p177
      %s180 = sadd.s32 %s179, 1
      %p183 = scmp.eq.s32.totalorder %s19, 1
      %p184 = scmp.ne.s32.totalorder %s179, %s181
      %p185 = scmp.eq.s32.totalorder %s19, 0
      %p186 = por %p184, %p185
      %p187 = scmp.ne.s32.totalorder %s179, %s181
      %p188 = scmp.eq.s32.totalorder %s24, 1
      %p189 = por %p187, %p188
      %p190 = scmp.ne.s32.totalorder %s181, %s182
      %p191 = scmp.eq.s32.totalorder %s24, 0
      %p192 = por %p190, %p191
      %p193 = scmp.ne.s32.totalorder %s181, %s182
      %p194 = scmp.eq.s32.totalorder %s25, 1
      %p195 = por %p193, %p194
      %p197 = scmp.ne.s32.totalorder %s182, %s196
      %p198 = scmp.eq.s32.totalorder %s25, 0
      %p199 = por %p197, %p198
      %s201 = sadd.s32 %s200, 1
      %p204 = scmp.eq.s32.totalorder %s19, 1
      %p205 = scmp.ne.s32.totalorder %s200, %s202
      %p206 = scmp.eq.s32.totalorder %s19, 0
      %p207 = por %p205, %p206
      %p208 = scmp.ne.s32.totalorder %s200, %s202
      %p209 = scmp.eq.s32.totalorder %s24, 1
      %p210 = por %p208, %p209
      %p211 = scmp.ne.s32.totalorder %s202, %s203
      %p212 = scmp.eq.s32.totalorder %s24, 0
      %p213 = por %p211, %p212
      %p214 = scmp.ne.s32.totalorder %s202, %s203
      %p215 = scmp.eq.s32.totalorder %s25, 1
      %p216 = por %p214, %p215
      %p218 = scmp.ne.s32.totalorder %s203, %s217
      %p219 = scmp.eq.s32.totalorder %s25, 0
      %p220 = por %p218, %p219
      %s221 = ssub.s32 %s19, %s26
      %p222 = scmp.eq.s32.totalorder %s221, 0
      %s224 = sadd.s32 %s223, 1
      %s225 = scalar_select %p222, %s223, %s224
      %p228 = pneg %p222
      %p229 = scmp.eq.s32.totalorder %s19, 1
      %p230 = por %p228, %p229
      %p231 = scmp.ne.s32.totalorder %s223, %s226
      %p232 = scmp.eq.s32.totalorder %s19, 0
      %p233 = por %p231, %p232
      %p234 = scmp.ne.s32.totalorder %s223, %s226
      %p235 = scmp.eq.s32.totalorder %s24, 1
      %p236 = por %p234, %p235
      %p237 = scmp.ne.s32.totalorder %s226, %s227
      %p238 = scmp.eq.s32.totalorder %s24, 0
      %p239 = por %p237, %p238
      %p240 = scmp.ne.s32.totalorder %s226, %s227
      %p241 = scmp.eq.s32.totalorder %s25, 1
      %p242 = por %p240, %p241
      %p244 = scmp.ne.s32.totalorder %s227, %s243
      %p245 = scmp.eq.s32.totalorder %s25, 0
      %p246 = por %p244, %p245
      %p247 = scmp.le.s32.totalorder 1, %s19
      %p248 = scmp.lt.s32.totalorder %s19, 3
      %p249 = pnand %p247, %p248
      %p250 = pneg %p249
      // Predicated region
      $region9: #{tpu_custom_call.1} parent=5 // pred_check
        _
      $region10: #{tpu_custom_call.1} parent=5 // pred_check_branch
        %252 = sbr.rel (%p249) target = $region12
      $region11: #{tpu_custom_call.1} parent=5 // pred_region
        %s253 = ssub.s32 %s19, 1
        // Predicated region
        $region13: #{tpu_custom_call.1} parent=11 // pred_check
          %p254 = pneg %p66
        $region14: #{tpu_custom_call.1} parent=11 // pred_check_branch
          %256 = sbr.rel (%p254) target = $region16
        $region15: #{tpu_custom_call.1} parent=11 // pred_region
          %s258 = ssub.s32 256, 256
          %259 = vsyncadd [#allocation5], %s258
          %s260 = sshll.u32 [#allocation4], 4
          %s261 = int_to_ptr.vmem [resolvable:$true] %s260
          %266 = dma.hbm_to_vmem [thread:$0]  %s1, 256, %s261, [#allocation5], 64, 64, 4
        $region16: #{tpu_custom_call.1} parent=11 // pred_fallthru
          _
        // Predicated region
        $region17: #{tpu_custom_call.1} parent=11 // pred_check
          %p267 = pneg %p87
        $region18: #{tpu_custom_call.1} parent=11 // pred_check_branch
          %269 = sbr.rel (%p267) target = $region20
        $region19: #{tpu_custom_call.1} parent=11 // pred_region
          _
        $region20: #{tpu_custom_call.1} parent=11 // pred_fallthru
          _
        // Predicated region
        $region21: #{tpu_custom_call.1} parent=11 // pred_check
          %p270 = pneg %p108
        $region22: #{tpu_custom_call.1} parent=11 // pred_check_branch
          %272 = sbr.rel (%p270) target = $region24
        $region23: #{tpu_custom_call.1} parent=11 // pred_region
          _
        $region24: #{tpu_custom_call.1} parent=11 // pred_fallthru
          _
        // Predicated region
        $region25: #{tpu_custom_call.1} parent=11 // pred_check
          %p273 = pneg %p129
        $region26: #{tpu_custom_call.1} parent=11 // pred_check_branch
          %275 = sbr.rel (%p273) target = $region28
        $region27: #{tpu_custom_call.1} parent=11 // pred_region
          _
        $region28: #{tpu_custom_call.1} parent=11 // pred_fallthru
          _
        // Predicated region
        $region29: #{tpu_custom_call.1} parent=11 // pred_check
          %p276 = pneg %p150
        $region30: #{tpu_custom_call.1} parent=11 // pred_check_branch
          %278 = sbr.rel (%p276) target = $region32
        $region31: #{tpu_custom_call.1} parent=11 // pred_region
          %s280 = ssub.s32 1024, 1024
          %281 = vsyncadd [#allocation5], %s280
          %s282 = sshll.u32 [#allocation6], 4
          %s283 = int_to_ptr.vmem [resolvable:$true] %s282
          %288 = dma.hbm_to_vmem [thread:$0]  %s5, 1024, %s283, [#allocation5], 64, 64, 4
        $region32: #{tpu_custom_call.1} parent=11 // pred_fallthru
          _
        // Predicated region
        $region33: #{tpu_custom_call.1} parent=11 // pred_check
          %p289 = pneg %p171
        $region34: #{tpu_custom_call.1} parent=11 // pred_check_branch
          %291 = sbr.rel (%p289) target = $region36
        $region35: #{tpu_custom_call.1} parent=11 // pred_region
          _
        $region36: #{tpu_custom_call.1} parent=11 // pred_fallthru
          _
        // Predicated region
        $region37: #{tpu_custom_call.1} parent=11 // pred_check
          %p292 = pneg %p192
        $region38: #{tpu_custom_call.1} parent=11 // pred_check_branch
          %294 = sbr.rel (%p292) target = $region40
        $region39: #{tpu_custom_call.1} parent=11 // pred_region
          _
        $region40: #{tpu_custom_call.1} parent=11 // pred_fallthru
          _
        // Predicated region
        $region41: #{tpu_custom_call.1} parent=11 // pred_check
          %p295 = pneg %p213
        $region42: #{tpu_custom_call.1} parent=11 // pred_check_branch
          %297 = sbr.rel (%p295) target = $region44
        $region43: #{tpu_custom_call.1} parent=11 // pred_region
          _
        $region44: #{tpu_custom_call.1} parent=11 // pred_fallthru
          _
      $region12: #{tpu_custom_call.1} parent=5 // pred_fallthru
        _
      %p298 = scmp.lt.s32.totalorder %s19, 2
      // Predicated region
      $region45: #{tpu_custom_call.1} parent=5 // pred_check
        %p299 = pneg %p298
      $region46: #{tpu_custom_call.1} parent=5 // pred_check_branch
        %301 = sbr.rel (%p299) target = $region48
      $region47: #{tpu_custom_call.1} parent=5 // pred_region
        // Predicated region
        $region49: #{tpu_custom_call.1} parent=47 // pred_check
          %p302 = pneg %p39
        $region50: #{tpu_custom_call.1} parent=47 // pred_check_branch
          %304 = sbr.rel (%p302) target = $region52
        $region51: #{tpu_custom_call.1} parent=47 // pred_region
          %s305 = sand.u32 %s29, 1
          %s306 = scalar_lea.sflag [#allocation3], %s305
          %s307 = sand.u32 %s29, 1
          %s308 = smul.addr %s307, 8
          %s309 = scalar_lea.vmem [#allocation2], %s308
          %s311 = ssub.s32 128, 128
          %312 = vsyncadd %s306, %s311
          %s313 = smul.addr %s19, 128
          %s314 = scalar_lea.hbm %s0, %s313
          %s316 = sshll.u32 %s309, 4
          %s317 = int_to_ptr.vmem [resolvable:$true] %s316
          %319 = dma.hbm_to_vmem [thread:$0]  %s314, 128, %s317, %s306
        $region52: #{tpu_custom_call.1} parent=47 // pred_fallthru
          _
      $region48: #{tpu_custom_call.1} parent=5 // pred_fallthru
        _
      %p320 = scmp.le.s32.totalorder 1, %s19
      %p321 = scmp.lt.s32.totalorder %s19, 3
      %p322 = pnand %p320, %p321
      %p323 = pneg %p322
      // Predicated region
      $region53: #{tpu_custom_call.1} parent=5 // pred_check
        _
      $region54: #{tpu_custom_call.1} parent=5 // pred_check_branch
        %325 = sbr.rel (%p322) target = $region56
      $region55: #{tpu_custom_call.1} parent=5 // pred_region
        %s326 = ssub.s32 %s19, 1
        %s327 = sand.u32 %s32, 1
        %s328 = scalar_lea.sflag [#allocation3], %s327
        %s329 = sand.u32 %s32, 1
        %s330 = smul.addr %s329, 8
        %s331 = scalar_lea.vmem [#allocation2], %s330
        // Predicated region
        $region57: #{tpu_custom_call.1} parent=55 // pred_check
          %p332 = pneg %p45
        $region58: #{tpu_custom_call.1} parent=55 // pred_check_branch
          %334 = sbr.rel (%p332) target = $region60
        $region59: #{tpu_custom_call.1} parent=55 // pred_region
          %335 = dma.done %s328, 128
        $region60: #{tpu_custom_call.1} parent=55 // pred_fallthru
          _
        // Predicated region
        $region61: #{tpu_custom_call.1} parent=55 // pred_check
          %p336 = pneg %p66
        $region62: #{tpu_custom_call.1} parent=55 // pred_check_branch
          %338 = sbr.rel (%p336) target = $region64
        $region63: #{tpu_custom_call.1} parent=55 // pred_region
          %339 = dma.done [#allocation5], 256
        $region64: #{tpu_custom_call.1} parent=55 // pred_fallthru
          _
        // Predicated region
        $region65: #{tpu_custom_call.1} parent=55 // pred_check
          %p340 = pneg %p150
        $region66: #{tpu_custom_call.1} parent=55 // pred_check_branch
          %342 = sbr.rel (%p340) target = $region68
        $region67: #{tpu_custom_call.1} parent=55 // pred_region
          %343 = dma.done [#allocation5], 1024
        $region68: #{tpu_custom_call.1} parent=55 // pred_fallthru
          _
        %s344 = sand.u32 %s32, 1
        %s345 = scalar_lea.sflag [#allocation3], %s344
        %s346 = sand.u32 %s32, 1
        %s347 = smul.addr %s346, 8
        %s348 = scalar_lea.vmem [#allocation2], %s347
        %p349 = pneg %p45
        %p350 = pneg %p42
        %p351 = pneg %p66
        %p352 = pneg %p63
        %p353 = pneg %p87
        %p354 = pneg %p84
        %p355 = pneg %p108
        %p356 = pneg %p105
        %p357 = pneg %p129
        %p358 = pneg %p126
        %p359 = pneg %p150
        %p360 = pneg %p147
        %p361 = pneg %p171
        %p362 = pneg %p168
        %p363 = pneg %p192
        %p364 = pneg %p189
        %p365 = pneg %p213
        %p366 = pneg %p210
        %p367 = pneg %p239
        %p368 = pneg %p236
        %p369 = scmp.lt.s32.totalorder %s24, 1
        %s370 = scalar_select %p369, %s24, 1
        %s371 = smul.addr %s370, 8
        %s372 = scalar_lea.vmem %s9, %s371
        %p373 = scmp.lt.s32.totalorder %s24, 1
        %s374 = scalar_select %p373, %s24, 1
        %s375 = smul.addr %s374, 8
        %s376 = scalar_lea.vmem %s9, %s375
        %v378 = vld [vmem:[%s331] sm:$0xff]
        %v379 = vpack.c.bf16 %v378, %v378
        %v380 = vld [vmem:[#allocation4] sm:$0xf]
        %v381 = vld [vmem:[#allocation4 + $0x4] sm:$0xf]
        %v382 = vld [vmem:[#allocation4 + $0x8] sm:$0xf]
        %v383 = vld [vmem:[#allocation4 + $0xc] sm:$0xf]
        %v384 = vld [vmem:[%s2] sm:$0x1]
        %v386 = vlaneseq
        %v387 = vshrl.u32 %v386, 7
        %v388 = vsub.s32 0, %v387
        %v389 = vrot.slane %v384, %v388
        %v395 = vunpack.c.l.b16 %v380
        %v396 = vunpack.c.l.b16 %v381
        %v397 = vunpack.c.l.b16 %v382
        %v398 = vunpack.c.l.b16 %v383
        %v399 = vpack.c.b16 %v396, %v395
        %v400 = vpack.c.b16 %v398, %v397
        %vm403 = vcmask 261120
        %v405 = vsel %vm403, %v379, 0
        %407 = vmatprep.subr.bf16.mxu0 0
        %408 = vmatpush1.bf16.msra.mxu0 0
        %409 = vmatprep.subr.bf16.mxu0 0
        %410 = vmatpush1.bf16.msra.mxu0 0
        %411 = vmatprep.subr.bf16.mxu0 0
        %412 = vmatpush1.bf16.msra.mxu0 0
        %413 = vmatprep.subr.bf16.mxu0 0
        %414 = vmatpush1.bf16.msra.mxu0 0
        %415 = vmatprep.subr.bf16.mxu0 0
        %416 = vmatpush1.bf16.msra.mxu0 0
        %417 = vmatprep.subr.bf16.mxu0 0
        %418 = vmatpush1.bf16.msra.mxu0 0
        %419 = vmatprep.subr.bf16.mxu0 0
        %420 = vmatpush1.bf16.msra.mxu0 %v400
        %421 = vmatprep.subr.bf16.mxu0 0
        %422 = vmatpush1.bf16.msra.mxu0 %v399
        %423 = vmatprep.subr.bf16.mxu0 0
        %424 = vmatpush2.bf16.msra.mxu0 0
        %425 = vmatprep.subr.bf16.mxu0 0
        %426 = vmatpush2.bf16.msra.mxu0 0
        %427 = vmatprep.subr.bf16.mxu0 0
        %428 = vmatpush2.bf16.msra.mxu0 0
        %429 = vmatprep.subr.bf16.mxu0 0
        %430 = vmatpush2.bf16.msra.mxu0 0
        %431 = vmatprep.subr.bf16.mxu0 0
        %432 = vmatpush2.bf16.msra.mxu0 0
        %433 = vmatprep.subr.bf16.mxu0 0
        %434 = vmatpush2.bf16.msra.mxu0 0
        %435 = vmatprep.subr.bf16.mxu0 0
        %436 = vmatpush2.bf16.msra.mxu0 0
        %437 = vmatprep.subr.bf16.mxu0 0
        %438 = vmatpush2.bf16.msra.mxu0 0
        %439 = vmatprep.mubr.bf16.mxu0 0
        %440 = vmatmul.mubr.bf16.gmra.mxu0 %v405
        %v441 = vpop.f32.mrf.mxu0
        %v442 = vadd.f32 %v389, %v441
        %v443 = vpop.f32.mrf.mxu0
        %v444 = vpop.f32.mrf.mxu0
        %v445 = vpop.f32.mrf.mxu0
        %446 = vdwg.mxu0
        %v447 = vmax.f32 %v442, 0.0
        %v448 = vpack.c.bf16 %v447, %v447
        %v449 = vld [vmem:[%s3] sm:$0xf]
        %v450 = vld [vmem:[%s3 + $0x4] sm:$0xf]
        %v451 = vld [vmem:[%s3 + $0x8] sm:$0xf]
        %v452 = vld [vmem:[%s3 + $0xc] sm:$0xf]
        %v453 = vld [vmem:[%s3 + $0x10] sm:$0xf]
        %v454 = vld [vmem:[%s3 + $0x14] sm:$0xf]
        %v455 = vld [vmem:[%s3 + $0x18] sm:$0xf]
        %v456 = vld [vmem:[%s3 + $0x1c] sm:$0xf]
        %v457 = vld [vmem:[%s3 + $0x20] sm:$0xf]
        %v458 = vld [vmem:[%s3 + $0x24] sm:$0xf]
        %v459 = vld [vmem:[%s3 + $0x28] sm:$0xf]
        %v460 = vld [vmem:[%s3 + $0x2c] sm:$0xf]
        %v461 = vld [vmem:[%s3 + $0x30] sm:$0xf]
        %v462 = vld [vmem:[%s3 + $0x34] sm:$0xf]
        %v463 = vld [vmem:[%s3 + $0x38] sm:$0xf]
        %v464 = vld [vmem:[%s3 + $0x3c] sm:$0xf]
        %v465 = vld [vmem:[%s4] sm:$0x1]
        %v467 = vlaneseq
        %v468 = vshrl.u32 %v467, 7
        %v469 = vsub.s32 0, %v468
        %v470 = vrot.slane %v465, %v469
        %v488 = vunpack.c.l.b16 %v449
        %v489 = vunpack.c.l.b16 %v450
        %v490 = vunpack.c.l.b16 %v451
        %v491 = vunpack.c.l.b16 %v452
        %v492 = vunpack.c.l.b16 %v453
        %v493 = vunpack.c.l.b16 %v454
        %v494 = vunpack.c.l.b16 %v455
        %v495 = vunpack.c.l.b16 %v456
        %v496 = vunpack.c.l.b16 %v457
        %v497 = vunpack.c.l.b16 %v458
        %v498 = vunpack.c.l.b16 %v459
        %v499 = vunpack.c.l.b16 %v460
        %v500 = vunpack.c.l.b16 %v461
        %v501 = vunpack.c.l.b16 %v462
        %v502 = vunpack.c.l.b16 %v463
        %v503 = vunpack.c.l.b16 %v464
        %v504 = vpack.c.b16 %v489, %v488
        %v505 = vpack.c.b16 %v491, %v490
        %v506 = vpack.c.b16 %v493, %v492
        %v507 = vpack.c.b16 %v495, %v494
        %v508 = vpack.c.b16 %v497, %v496
        %v509 = vpack.c.b16 %v499, %v498
        %v510 = vpack.c.b16 %v501, %v500
        %v511 = vpack.c.b16 %v503, %v502
        %520 = vmatprep.subr.bf16.mxu0 0
        %521 = vmatpush1.bf16.msra.mxu0 %v511
        %522 = vmatprep.subr.bf16.mxu0 0
        %523 = vmatpush1.bf16.msra.mxu0 %v510
        %524 = vmatprep.subr.bf16.mxu0 0
        %525 = vmatpush1.bf16.msra.mxu0 %v509
        %526 = vmatprep.subr.bf16.mxu0 0
        %527 = vmatpush1.bf16.msra.mxu0 %v508
        %528 = vmatprep.subr.bf16.mxu0 0
        %529 = vmatpush1.bf16.msra.mxu0 %v507
        %530 = vmatprep.subr.bf16.mxu0 0
        %531 = vmatpush1.bf16.msra.mxu0 %v506
        %532 = vmatprep.subr.bf16.mxu0 0
        %533 = vmatpush1.bf16.msra.mxu0 %v505
        %534 = vmatprep.subr.bf16.mxu0 0
        %535 = vmatpush1.bf16.msra.mxu0 %v504
        %536 = vmatprep.subr.bf16.mxu0 0
        %537 = vmatpush2.bf16.msra.mxu0 0
        %538 = vmatprep.subr.bf16.mxu0 0
        %539 = vmatpush2.bf16.msra.mxu0 0
        %540 = vmatprep.subr.bf16.mxu0 0
        %541 = vmatpush2.bf16.msra.mxu0 0
        %542 = vmatprep.subr.bf16.mxu0 0
        %543 = vmatpush2.bf16.msra.mxu0 0
        %544 = vmatprep.subr.bf16.mxu0 0
        %545 = vmatpush2.bf16.msra.mxu0 0
        %546 = vmatprep.subr.bf16.mxu0 0
        %547 = vmatpush2.bf16.msra.mxu0 0
        %548 = vmatprep.subr.bf16.mxu0 0
        %549 = vmatpush2.bf16.msra.mxu0 0
        %550 = vmatprep.subr.bf16.mxu0 0
        %551 = vmatpush2.bf16.msra.mxu0 0
        %552 = vmatprep.mubr.bf16.mxu0 0
        %553 = vmatmul.mubr.bf16.gmra.mxu0 %v448
        %v554 = vpop.f32.mrf.mxu0
        %v555 = vadd.f32 %v470, %v554
        %v556 = vpop.f32.mrf.mxu0
        %v557 = vpop.f32.mrf.mxu0
        %v558 = vpop.f32.mrf.mxu0
        %559 = vdwg.mxu0
        %v560 = vmax.f32 %v555, 0.0
        %v561 = vpack.c.bf16 %v560, %v560
        %v562 = vld [vmem:[#allocation6] sm:$0xf]
        %v563 = vld [vmem:[#allocation6 + $0x4] sm:$0xf]
        %v564 = vld [vmem:[#allocation6 + $0x8] sm:$0xf]
        %v565 = vld [vmem:[#allocation6 + $0xc] sm:$0xf]
        %v566 = vld [vmem:[#allocation6 + $0x10] sm:$0xf]
        %v567 = vld [vmem:[#allocation6 + $0x14] sm:$0xf]
        %v568 = vld [vmem:[#allocation6 + $0x18] sm:$0xf]
        %v569 = vld [vmem:[#allocation6 + $0x1c] sm:$0xf]
        %v570 = vld [vmem:[#allocation6 + $0x20] sm:$0xf]
        %v571 = vld [vmem:[#allocation6 + $0x24] sm:$0xf]
        %v572 = vld [vmem:[#allocation6 + $0x28] sm:$0xf]
        %v573 = vld [vmem:[#allocation6 + $0x2c] sm:$0xf]
        %v574 = vld [vmem:[#allocation6 + $0x30] sm:$0xf]
        %v575 = vld [vmem:[#allocation6 + $0x34] sm:$0xf]
        %v576 = vld [vmem:[#allocation6 + $0x38] sm:$0xf]
        %v577 = vld [vmem:[#allocation6 + $0x3c] sm:$0xf]
        %v578 = vld [vmem:[%s6] sm:$0x1]
        %v580 = vlaneseq
        %v581 = vshrl.u32 %v580, 7
        %v582 = vsub.s32 0, %v581
        %v583 = vrot.slane %v578, %v582
        %v601 = vunpack.c.l.b16 %v562
        %v602 = vunpack.c.l.b16 %v563
        %v603 = vunpack.c.l.b16 %v564
        %v604 = vunpack.c.l.b16 %v565
        %v605 = vunpack.c.l.b16 %v566
        %v606 = vunpack.c.l.b16 %v567
        %v607 = vunpack.c.l.b16 %v568
        %v608 = vunpack.c.l.b16 %v569
        %v609 = vunpack.c.l.b16 %v570
        %v610 = vunpack.c.l.b16 %v571
        %v611 = vunpack.c.l.b16 %v572
        %v612 = vunpack.c.l.b16 %v573
        %v613 = vunpack.c.l.b16 %v574
        %v614 = vunpack.c.l.b16 %v575
        %v615 = vunpack.c.l.b16 %v576
        %v616 = vunpack.c.l.b16 %v577
        %v617 = vpack.c.b16 %v602, %v601
        %v618 = vpack.c.b16 %v604, %v603
        %v619 = vpack.c.b16 %v606, %v605
        %v620 = vpack.c.b16 %v608, %v607
        %v621 = vpack.c.b16 %v610, %v609
        %v622 = vpack.c.b16 %v612, %v611
        %v623 = vpack.c.b16 %v614, %v613
        %v624 = vpack.c.b16 %v616, %v615
        %633 = vmatprep.subr.bf16.mxu0 0
        %634 = vmatpush1.bf16.msra.mxu0 %v624
        %635 = vmatprep.subr.bf16.mxu0 0
        %636 = vmatpush1.bf16.msra.mxu0 %v623
        %637 = vmatprep.subr.bf16.mxu0 0
        %638 = vmatpush1.bf16.msra.mxu0 %v622
        %639 = vmatprep.subr.bf16.mxu0 0
        %640 = vmatpush1.bf16.msra.mxu0 %v621
        %641 = vmatprep.subr.bf16.mxu0 0
        %642 = vmatpush1.bf16.msra.mxu0 %v620
        %643 = vmatprep.subr.bf16.mxu0 0
        %644 = vmatpush1.bf16.msra.mxu0 %v619
        %645 = vmatprep.subr.bf16.mxu0 0
        %646 = vmatpush1.bf16.msra.mxu0 %v618
        %647 = vmatprep.subr.bf16.mxu0 0
        %648 = vmatpush1.bf16.msra.mxu0 %v617
        %649 = vmatprep.subr.bf16.mxu0 0
        %650 = vmatpush2.bf16.msra.mxu0 0
        %651 = vmatprep.subr.bf16.mxu0 0
        %652 = vmatpush2.bf16.msra.mxu0 0
        %653 = vmatprep.subr.bf16.mxu0 0
        %654 = vmatpush2.bf16.msra.mxu0 0
        %655 = vmatprep.subr.bf16.mxu0 0
        %656 = vmatpush2.bf16.msra.mxu0 0
        %657 = vmatprep.subr.bf16.mxu0 0
        %658 = vmatpush2.bf16.msra.mxu0 0
        %659 = vmatprep.subr.bf16.mxu0 0
        %660 = vmatpush2.bf16.msra.mxu0 0
        %661 = vmatprep.subr.bf16.mxu0 0
        %662 = vmatpush2.bf16.msra.mxu0 0
        %663 = vmatprep.subr.bf16.mxu0 0
        %664 = vmatpush2.bf16.msra.mxu0 0
        %665 = vmatprep.mubr.bf16.mxu0 0
        %666 = vmatmul.mubr.bf16.gmra.mxu0 %v561
        %v667 = vpop.f32.mrf.mxu0
        %v668 = vadd.f32 %v583, %v667
        %v669 = vpop.f32.mrf.mxu0
        %v670 = vpop.f32.mrf.mxu0
        %v671 = vpop.f32.mrf.mxu0
        %672 = vdwg.mxu0
        %v673 = vmax.f32 %v668, 0.0
        %v674 = vpack.c.bf16 %v673, %v673
        %v675 = vld [vmem:[%s7] sm:$0xf]
        %v676 = vld [vmem:[%s7 + $0x4] sm:$0xf]
        %v677 = vld [vmem:[%s7 + $0x8] sm:$0xf]
        %v678 = vld [vmem:[%s7 + $0xc] sm:$0xf]
        %v679 = vld [vmem:[%s7 + $0x10] sm:$0xf]
        %v680 = vld [vmem:[%s7 + $0x14] sm:$0xf]
        %v681 = vld [vmem:[%s7 + $0x18] sm:$0xf]
        %v682 = vld [vmem:[%s7 + $0x1c] sm:$0xf]
        %v683 = vld [vmem:[%s7 + $0x20] sm:$0xf]
        %v684 = vld [vmem:[%s7 + $0x24] sm:$0xf]
        %v685 = vld [vmem:[%s7 + $0x28] sm:$0xf]
        %v686 = vld [vmem:[%s7 + $0x2c] sm:$0xf]
        %v687 = vld [vmem:[%s7 + $0x30] sm:$0xf]
        %v688 = vld [vmem:[%s7 + $0x34] sm:$0xf]
        %v689 = vld [vmem:[%s7 + $0x38] sm:$0xf]
        %v690 = vld [vmem:[%s7 + $0x3c] sm:$0xf]
        %v691 = vld [vmem:[%s8] sm:$0x1]
        %v693 = vlaneseq
        %v694 = vshrl.u32 %v693, 7
        %v695 = vsub.s32 0, %v694
        %v696 = vrot.slane %v691, %v695
        %v714 = vunpack.c.l.b16 %v675
        %v715 = vunpack.c.l.b16 %v676
        %v716 = vunpack.c.l.b16 %v677
        %v717 = vunpack.c.l.b16 %v678
        %v718 = vunpack.c.l.b16 %v679
        %v719 = vunpack.c.l.b16 %v680
        %v720 = vunpack.c.l.b16 %v681
        %v721 = vunpack.c.l.b16 %v682
        %v722 = vunpack.c.l.b16 %v683
        %v723 = vunpack.c.l.b16 %v684
        %v724 = vunpack.c.l.b16 %v685
        %v725 = vunpack.c.l.b16 %v686
        %v726 = vunpack.c.l.b16 %v687
        %v727 = vunpack.c.l.b16 %v688
        %v728 = vunpack.c.l.b16 %v689
        %v729 = vunpack.c.l.b16 %v690
        %v730 = vpack.c.b16 %v715, %v714
        %v731 = vpack.c.b16 %v717, %v716
        %v732 = vpack.c.b16 %v719, %v718
        %v733 = vpack.c.b16 %v721, %v720
        %v734 = vpack.c.b16 %v723, %v722
        %v735 = vpack.c.b16 %v725, %v724
        %v736 = vpack.c.b16 %v727, %v726
        %v737 = vpack.c.b16 %v729, %v728
        %746 = vmatprep.subr.bf16.mxu0 0
        %747 = vmatpush1.bf16.msra.mxu0 %v737
        %748 = vmatprep.subr.bf16.mxu0 0
        %749 = vmatpush1.bf16.msra.mxu0 %v736
        %750 = vmatprep.subr.bf16.mxu0 0
        %751 = vmatpush1.bf16.msra.mxu0 %v735
        %752 = vmatprep.subr.bf16.mxu0 0
        %753 = vmatpush1.bf16.msra.mxu0 %v734
        %754 = vmatprep.subr.bf16.mxu0 0
        %755 = vmatpush1.bf16.msra.mxu0 %v733
        %756 = vmatprep.subr.bf16.mxu0 0
        %757 = vmatpush1.bf16.msra.mxu0 %v732
        %758 = vmatprep.subr.bf16.mxu0 0
        %759 = vmatpush1.bf16.msra.mxu0 %v731
        %760 = vmatprep.subr.bf16.mxu0 0
        %761 = vmatpush1.bf16.msra.mxu0 %v730
        %762 = vmatprep.subr.bf16.mxu0 0
        %763 = vmatpush2.bf16.msra.mxu0 0
        %764 = vmatprep.subr.bf16.mxu0 0
        %765 = vmatpush2.bf16.msra.mxu0 0
        %766 = vmatprep.subr.bf16.mxu0 0
        %767 = vmatpush2.bf16.msra.mxu0 0
        %768 = vmatprep.subr.bf16.mxu0 0
        %769 = vmatpush2.bf16.msra.mxu0 0
        %770 = vmatprep.subr.bf16.mxu0 0
        %771 = vmatpush2.bf16.msra.mxu0 0
        %772 = vmatprep.subr.bf16.mxu0 0
        %773 = vmatpush2.bf16.msra.mxu0 0
        %774 = vmatprep.subr.bf16.mxu0 0
        %775 = vmatpush2.bf16.msra.mxu0 0
        %776 = vmatprep.subr.bf16.mxu0 0
        %777 = vmatpush2.bf16.msra.mxu0 0
        %778 = vmatprep.mubr.bf16.mxu0 0
        %779 = vmatmul.mubr.bf16.gmra.mxu0 %v674
        %v780 = vpop.f32.mrf.mxu0
        %v781 = vadd.f32 %v696, %v780
        %v782 = vpop.f32.mrf.mxu0
        %v783 = vpop.f32.mrf.mxu0
        %v784 = vpop.f32.mrf.mxu0
        %785 = vdwg.mxu0
        %vm786 = vcmask 15360
        %787 = vst.msk [vmem:[%s376] sm:$0xff] %vm786, %v781
        %p788 = scmp.lt.s32.totalorder %s24, 1
        %s789 = scalar_select %p788, %s24, 1
        %s790 = smul.addr %s789, 8
        %s791 = scalar_lea.vmem %s9, %s790
        // Predicated region
        $region69: #{tpu_custom_call.1} parent=55 // pred_check
          %p792 = pneg %p236
        $region70: #{tpu_custom_call.1} parent=55 // pred_check_branch
          %794 = sbr.rel (%p792) target = $region72
        $region71: #{tpu_custom_call.1} parent=55 // pred_region
          _
        $region72: #{tpu_custom_call.1} parent=55 // pred_fallthru
          _
      $region56: #{tpu_custom_call.1} parent=5 // pred_fallthru
        _
      %p795 = scmp.le.s32.totalorder 2, %s19
      // Predicated region
      $region73: #{tpu_custom_call.1} parent=5 // pred_check
        %p796 = pneg %p795
      $region74: #{tpu_custom_call.1} parent=5 // pred_check_branch
        %798 = sbr.rel (%p796) target = $region76
      $region75: #{tpu_custom_call.1} parent=5 // pred_region
        %s799 = ssub.s32 %s19, 2
        // Predicated region
        $region77: #{tpu_custom_call.1} parent=75 // pred_check
          %p800 = pneg %p242
        $region78: #{tpu_custom_call.1} parent=75 // pred_check_branch
          %802 = sbr.rel (%p800) target = $region80
        $region79: #{tpu_custom_call.1} parent=75 // pred_region
          %p803 = scmp.lt.s32.totalorder %s25, 1
          %s804 = scalar_select %p803, %s25, 1
          %s805 = smul.addr %s804, 8
          %s806 = scalar_lea.vmem %s9, %s805
        $region80: #{tpu_custom_call.1} parent=75 // pred_fallthru
          _
      $region76: #{tpu_custom_call.1} parent=5 // pred_fallthru
        _
    $region6: #{tpu_custom_call.1} parent=1 // loop_footer
      %s23 = sadd.s32 1, %s19
    $region7: #{tpu_custom_call.1} parent=1 // loop_footer_branch
      %18 = sbr.rel target = $region3
    $region8: #{tpu_custom_call.1} parent=1 // loop_exit
      _
    %807 = vsyncpa [#allocation3], 1
    %s808 = scalar_lea.sflag [#allocation3], 1
    %809 = vsyncpa %s808, 1
    %810 = vsyncpa [#allocation5], 1

</llo_original>
